<compile_context>
chip_gen: v5e
topology: v5e:2x2
jax: 0.10.0
libtpu: 0.0.40
codegen_flags: <defaults>
</compile_context>

<pallas_src>
import functools
import math

import jax
import jax.numpy as jnp
from jax import lax
from jax.experimental import pallas as pl
from jax.experimental.pallas import tpu as pltpu


# ---------------------------------------------------------------------------
# Kernel body
# ---------------------------------------------------------------------------
def _geglu_kernel(x_ref, wa_ref, wg_ref, ba_ref, bg_ref, o_ref, *, approximate):
    # x_ref : (tm, d_in)   matmul operand (bf16 or f32)
    # wa_ref: (d_in, tn)   value half of proj weight, pre-transposed
    # wg_ref: (d_in, tn)   gate  half of proj weight, pre-transposed
    # ba_ref: (1, tn)      f32 bias (value half)
    # bg_ref: (1, tn)      f32 bias (gate half)
    # o_ref : (tm, tn)
    x = x_ref[...]
    # Two MXU matmuls with f32 accumulation; bias added post-accumulation.
    a = jnp.dot(x, wa_ref[...], preferred_element_type=jnp.float32) + ba_ref[...]
    g = jnp.dot(x, wg_ref[...], preferred_element_type=jnp.float32) + bg_ref[...]
    if approximate:
        # tanh GELU: transcendental goes to the EUP (its own bundle slot), so
        # the epilogue stops competing with the MXU-feeding VALU on v6e/v7x.
        c = math.sqrt(2.0 / math.pi)
        gelu_g = 0.5 * g * (1.0 + jnp.tanh(c * (g + 0.044715 * g * g * g)))
    else:
        # Exact erf GELU (matches torch.nn.functional.gelu default).
        gelu_g = 0.5 * g * (1.0 + lax.erf(g * (1.0 / math.sqrt(2.0))))
    o_ref[...] = (a * gelu_g).astype(o_ref.dtype)


# ---------------------------------------------------------------------------
# One-time parameter prep (outside the hot path)
# ---------------------------------------------------------------------------
def prepare_geglu_params(w, b, dim_out, *, param_dtype=jnp.bfloat16):
    """Split nn.Linear(dim_in, 2*dim_out) params into value/gate halves,
    transpose weights to [d_in, d_out], cast weights to the matmul operand
    dtype; biases stay f32 (added post-accumulation)."""
    wa = jnp.asarray(w[:dim_out, :].T, dtype=param_dtype)   # [d_in, d_out]
    wg = jnp.asarray(w[dim_out:, :].T, dtype=param_dtype)   # [d_in, d_out]
    ba = jnp.asarray(b[:dim_out], dtype=jnp.float32).reshape(1, dim_out)
    bg = jnp.asarray(b[dim_out:], dtype=jnp.float32).reshape(1, dim_out)
    return wa, wg, ba, bg


# ---------------------------------------------------------------------------
# VMEM budgeting / tile selection
# ---------------------------------------------------------------------------
@functools.lru_cache(maxsize=1)
def _physical_vmem_bytes():
    try:
        v = int(pltpu.get_tpu_info().vmem_capacity_bytes)
        if v > 0:
            return v
    except Exception:
        pass
    return 64 * 2**20  # conservative fallback: smallest per-TC VMEM (v7x)


@functools.lru_cache(maxsize=1)
def _supports_buffered():
    try:
        pl.BlockSpec((8, 128), lambda j, i: (0, j), pipeline_mode=pl.Buffered(1))
        return True
    except Exception:
        return False


def _vmem_estimate_bytes(tm, tn, d_in, x_bytes, w_bytes, o_bytes, weight_bufs):
    return int(
        2 * tm * d_in * x_bytes                  # x row tile, double-buffered
        + weight_bufs * 2 * d_in * tn * w_bytes  # two weight halves
        + weight_bufs * 2 * tn * 4               # two f32 bias tiles
        + 2 * tm * tn * o_bytes                  # output tile, double-buffered
        + 3 * tm * tn * 4                        # f32 intermediates a/g/gelu
    )


def _pick_tile(dim, align, target):
    """Largest multiple-of-`align` divisor of `dim` that is <= `target`; falls
    back to `target` (Pallas masks the ragged last tile) if no divisor, or the
    whole dim if it is already small."""
    if dim <= target:
        return dim
    best = 0
    cand = align
    while cand <= target:
        if dim % cand == 0:
            best = cand
        cand += align
    return best if best else target


def _pick_tiles(M, d_in, d_out, x_bytes, w_bytes, o_bytes, budget,
                weight_bufs, tm_req, tn_req):
    def fits(tm, tn):
        return _vmem_estimate_bytes(
            tm, tn, d_in, x_bytes, w_bytes, o_bytes, weight_bufs) <= budget

    if tm_req is not None:
        tm_cands = [tm_req]
    else:
        tm_cands = []
        for t in (512, 256, 128, 64, 32, 16, 8):
            c = _pick_tile(M, 8, t)
            if c not in tm_cands:
                tm_cands.append(c)

    if tn_req is not None:
        tn_cands = [tn_req]
    else:
        # Prefer a fully weight-resident layout (tn = d_out): x, W and the
        # output each cross HBM exactly once.  Then lane-dense 128-multiples.
        tn_cands = [d_out]
        for t in (1024, 512, 256, 128):
            c = _pick_tile(d_out, 128, t)
            if c not in tn_cands:
                tn_cands.append(c)

    for tn in tn_cands:
        for tm in tm_cands:
            if fits(tm, tn):
                return tm, tn
    # Nothing fits the budget: return the smallest candidates and let the
    # compiler report a real OOM if it truly cannot fit.
    return tm_cands[-1], tn_cands[-1]


# ---------------------------------------------------------------------------
# Public entry point
# ---------------------------------------------------------------------------
@functools.partial(
    jax.jit,
    static_argnames=("out_dtype", "tm", "tn", "approximate",
                     "single_buffer_weights"))
def geglu(x, wa, wg, ba, bg, *, out_dtype=None, tm=None, tn=None,
          approximate=False, single_buffer_weights=True):
    """x: [B, S, d_in]; wa/wg: [d_in, d_out]; ba/bg: [1, d_out]."""
    B, S, d_in = x.shape
    d_out = wa.shape[1]
    M = B * S
    x2 = x.reshape(M, d_in)
    out_dtype = x.dtype if out_dtype is None else out_dtype

    x_bytes = jnp.dtype(x.dtype).itemsize
    w_bytes = jnp.dtype(wa.dtype).itemsize
    o_bytes = jnp.dtype(out_dtype).itemsize

    physical = _physical_vmem_bytes()
    # Usable cap: physical minus headroom (~112 MiB on v5e/v6e, ~48 MiB v7x).
    cap = max(physical - 16 * 2**20, 16 * 2**20)
    # Keep a further margin when picking tiles so Mosaic scratch fits.
    pick_budget = max(cap - 8 * 2**20, 8 * 2**20)

    weight_bufs = 1 if (single_buffer_weights and _supports_buffered()) else 2

    tm, tn = _pick_tiles(M, d_in, d_out, x_bytes, w_bytes, o_bytes,
                         pick_budget, weight_bufs, tm, tn)

    est = _vmem_estimate_bytes(tm, tn, d_in, x_bytes, w_bytes, o_bytes,
                               weight_bufs)
    vmem_limit = int(min(cap, max(32 * 2**20, est + 12 * 2**20)))

    w_map = lambda j, i: (0, j)
    if weight_bufs == 1:
        # Weight/bias block index is constant across the inner row sweep; a
        # second pipeline buffer would be pure VMEM waste.
        w_spec = pl.BlockSpec((d_in, tn), w_map, pipeline_mode=pl.Buffered(1))
        b_spec = pl.BlockSpec((1, tn), w_map, pipeline_mode=pl.Buffered(1))
    else:
        w_spec = pl.BlockSpec((d_in, tn), w_map)
        b_spec = pl.BlockSpec((1, tn), w_map)

    # N tiles OUTER, M row tiles inner: the weight tile is fetched once per
    # N tile while x/out row tiles stream; no reduction axis (full d_in
    # contraction in-kernel), so both axes are parallel for megacore.
    grid = (pl.cdiv(d_out, tn), pl.cdiv(M, tm))

    out2 = pl.pallas_call(
        functools.partial(_geglu_kernel, approximate=approximate),
        out_shape=jax.ShapeDtypeStruct((M, d_out), out_dtype),
        grid_spec=pltpu.PrefetchScalarGridSpec(
            num_scalar_prefetch=0,
            grid=grid,
            in_specs=[
                pl.BlockSpec((tm, d_in), lambda j, i: (i, 0)),  # x row tile
                w_spec,   # value-half weight (constant across inner sweep)
                w_spec,   # gate-half weight
                b_spec,   # value-half bias
                b_spec,   # gate-half bias
            ],
            out_specs=pl.BlockSpec((tm, tn), lambda j, i: (i, j)),
        ),
        compiler_params=pltpu.CompilerParams(
            dimension_semantics=("parallel", "parallel"),
            vmem_limit_bytes=vmem_limit,
        ),
    )(x2, wa, wg, ba, bg)

    return out2.reshape(B, S, d_out)


# ---------------------------------------------------------------------------
# Pure-JAX reference (same pre-split params / operand dtypes)
# ---------------------------------------------------------------------------
def geglu_reference(x, wa, wg, ba, bg, *, approximate=False):
    a = jnp.einsum("bsd,do->bso", x, wa, preferred_element_type=jnp.float32) + ba
    g = jnp.einsum("bsd,do->bso", x, wg, preferred_element_type=jnp.float32) + bg
    return a * jax.nn.gelu(g, approximate=approximate)


if __name__ == "__main__":
    B, S, dim_in, dim_out = 2, 8, 32, 32

    key = jax.random.PRNGKey(0)
    kx, kw, kb = jax.random.split(key, 3)

    # Deterministic init matching nn.Linear(dim_in, dim_out*2):
    # U(-1/sqrt(dim_in), 1/sqrt(dim_in)) for both weight and bias.
    bound = 1.0 / math.sqrt(dim_in)
    w = jax.random.uniform(kw, (2 * dim_out, dim_in), jnp.float32, -bound, bound)
    b = jax.random.uniform(kb, (2 * dim_out,), jnp.float32, -bound, bound)
    x = jax.random.normal(kx, (B, S, dim_in), jnp.float32)

    # One-time param prep (hoisted out of the jitted hot path), bf16 operands.
    wa, wg, ba, bg = prepare_geglu_params(w, b, dim_out, param_dtype=jnp.bfloat16)
    x_bf16 = x.astype(jnp.bfloat16)

    try:
        out = geglu(x_bf16, wa, wg, ba, bg)          # out dtype = bf16 (input dtype)
    except Exception:
        # Safety net if this Pallas build rejects single-buffered weight specs.
        out = geglu(x_bf16, wa, wg, ba, bg, single_buffer_weights=False)
    out = jax.block_until_ready(out)

    # Reference with the SAME bf16 matmul operands + f32 accumulation/math.
    ref = geglu_reference(x_bf16, wa, wg, ba, bg)
    assert out.shape == (B, S, dim_out)
    assert jnp.allclose(out.astype(jnp.float32), ref.astype(jnp.float32),
                        atol=2e-2, rtol=2e-2), "mismatch vs reference"

    print("KERNEL_OK")
</pallas_src>

<mosaic_0001>
module attributes {stable_mosaic.version = 11 : i64} {
  func.func @_geglu_kernel(%arg0: i32, %arg1: i32, %arg2: memref<16x32xbf16, #tpu.memory_space<vmem>>, %arg3: memref<32x32xbf16, #tpu.memory_space<vmem>>, %arg4: memref<32x32xbf16, #tpu.memory_space<vmem>>, %arg5: memref<1x32xf32, #tpu.memory_space<vmem>>, %arg6: memref<1x32xf32, #tpu.memory_space<vmem>>, %arg7: memref<16x32xbf16, #tpu.memory_space<vmem>>) attributes {dimension_semantics = [#tpu.dimension_semantics<parallel>, #tpu.dimension_semantics<parallel>], iteration_bounds = array<i64: 1, 1>, scalar_prefetch = 0 : i64, scratch_operands = 0 : i64, tpu.core_type = #tpu.core_type<tc>, window_params = [{transform_indices = @transform_0, window_bounds = array<i64: 16, 32>}, {pipeline_mode = #tpu.pipeline_mode<synchronous>, transform_indices = @transform_1, window_bounds = array<i64: 32, 32>}, {pipeline_mode = #tpu.pipeline_mode<synchronous>, transform_indices = @transform_2, window_bounds = array<i64: 32, 32>}, {pipeline_mode = #tpu.pipeline_mode<synchronous>, transform_indices = @transform_3, window_bounds = array<i64: 1, 32>}, {pipeline_mode = #tpu.pipeline_mode<synchronous>, transform_indices = @transform_4, window_bounds = array<i64: 1, 32>}, {transform_indices = @transform_5, window_bounds = array<i64: 16, 32>}]} {
    %c0 = arith.constant 0 : index
    %c0_0 = arith.constant 0 : index
    %0 = vector.load %arg2[%c0, %c0_0] : memref<16x32xbf16, #tpu.memory_space<vmem>>, vector<16x32xbf16>
    %c0_1 = arith.constant 0 : index
    %c0_2 = arith.constant 0 : index
    %1 = vector.load %arg3[%c0_1, %c0_2] : memref<32x32xbf16, #tpu.memory_space<vmem>>, vector<32x32xbf16>
    %cst = arith.constant dense<0.000000e+00> : vector<16x32xf32>
    %2 = tpu.matmul %0, %1, %cst {dimension_numbers = #tpu.dot_dimension_numbers<[1], [0], [0], [1], [0, 0, 1, 1], [], []>} : vector<16x32xbf16>, vector<32x32xbf16>, vector<16x32xf32> -> vector<16x32xf32>
    %c0_3 = arith.constant 0 : index
    %c0_4 = arith.constant 0 : index
    %3 = vector.load %arg5[%c0_3, %c0_4] : memref<1x32xf32, #tpu.memory_space<vmem>>, vector<1x32xf32>
    %4 = vector.broadcast %3 : vector<1x32xf32> to vector<16x32xf32>
    %5 = arith.addf %2, %4 : vector<16x32xf32>
    %c0_5 = arith.constant 0 : index
    %c0_6 = arith.constant 0 : index
    %6 = vector.load %arg4[%c0_5, %c0_6] : memref<32x32xbf16, #tpu.memory_space<vmem>>, vector<32x32xbf16>
    %cst_7 = arith.constant dense<0.000000e+00> : vector<16x32xf32>
    %7 = tpu.matmul %0, %6, %cst_7 {dimension_numbers = #tpu.dot_dimension_numbers<[1], [0], [0], [1], [0, 0, 1, 1], [], []>} : vector<16x32xbf16>, vector<32x32xbf16>, vector<16x32xf32> -> vector<16x32xf32>
    %c0_8 = arith.constant 0 : index
    %c0_9 = arith.constant 0 : index
    %8 = vector.load %arg6[%c0_8, %c0_9] : memref<1x32xf32, #tpu.memory_space<vmem>>, vector<1x32xf32>
    %9 = vector.broadcast %8 : vector<1x32xf32> to vector<16x32xf32>
    %10 = arith.addf %7, %9 : vector<16x32xf32>
    %cst_10 = arith.constant 5.000000e-01 : f32
    %11 = vector.broadcast %cst_10 : f32 to vector<16x32xf32>
    %12 = arith.mulf %11, %10 : vector<16x32xf32>
    %cst_11 = arith.constant 0.707106769 : f32
    %13 = vector.broadcast %cst_11 : f32 to vector<16x32xf32>
    %14 = arith.mulf %10, %13 : vector<16x32xf32>
    %15 = math.erf %14 : vector<16x32xf32>
    %cst_12 = arith.constant 1.000000e+00 : f32
    %16 = vector.broadcast %cst_12 : f32 to vector<16x32xf32>
    %17 = arith.addf %16, %15 : vector<16x32xf32>
    %18 = arith.mulf %12, %17 : vector<16x32xf32>
    %19 = arith.mulf %5, %18 : vector<16x32xf32>
    %20 = arith.truncf %19 : vector<16x32xf32> to vector<16x32xbf16>
    %c0_13 = arith.constant 0 : index
    %c0_14 = arith.constant 0 : index
    %21 = vector.load %arg7[%c0_13, %c0_14] : memref<16x32xbf16, #tpu.memory_space<vmem>>, vector<16x32xbf16>
    tpu.vector_store %arg7[%c0_13, %c0_14], %20 {strides = array<i32>} : memref<16x32xbf16, #tpu.memory_space<vmem>>, vector<16x32xbf16>,
    return
  }
  func.func @transform_0(%arg0: i32, %arg1: i32) -> (i32, i32) {
    %c0_i32 = arith.constant 0 : i32
    %c0_i32_0 = arith.constant 0 : i32
    return %arg1, %c0_i32 : i32, i32
  }
  func.func @transform_1(%arg0: i32, %arg1: i32) -> (i32, i32) {
    %c0_i32 = arith.constant 0 : i32
    %c0_i32_0 = arith.constant 0 : i32
    return %c0_i32, %arg0 : i32, i32
  }
  func.func @transform_2(%arg0: i32, %arg1: i32) -> (i32, i32) {
    %c0_i32 = arith.constant 0 : i32
    %c0_i32_0 = arith.constant 0 : i32
    return %c0_i32, %arg0 : i32, i32
  }
  func.func @transform_3(%arg0: i32, %arg1: i32) -> (i32, i32) {
    %c0_i32 = arith.constant 0 : i32
    %c0_i32_0 = arith.constant 0 : i32
    return %c0_i32, %arg0 : i32, i32
  }
  func.func @transform_4(%arg0: i32, %arg1: i32) -> (i32, i32) {
    %c0_i32 = arith.constant 0 : i32
    %c0_i32_0 = arith.constant 0 : i32
    return %c0_i32, %arg0 : i32, i32
  }
  func.func @transform_5(%arg0: i32, %arg1: i32) -> (i32, i32) {
    %c0_i32 = arith.constant 0 : i32
    return %arg1, %arg0 : i32, i32
  }
}

module attributes {stable_mosaic.version = 11 : i64} {
  func.func @_geglu_kernel(%arg0: i32, %arg1: i32, %arg2: memref<16x32xbf16, #tpu.memory_space<vmem>>, %arg3: memref<32x32xbf16, #tpu.memory_space<vmem>>, %arg4: memref<32x32xbf16, #tpu.memory_space<vmem>>, %arg5: memref<1x32xf32, #tpu.memory_space<vmem>>, %arg6: memref<1x32xf32, #tpu.memory_space<vmem>>, %arg7: memref<16x32xbf16, #tpu.memory_space<vmem>>) attributes {dimension_semantics = [#tpu.dimension_semantics<parallel>, #tpu.dimension_semantics<parallel>], iteration_bounds = array<i64: 1, 1>, scalar_prefetch = 0 : i64, scratch_operands = 0 : i64, tpu.core_type = #tpu.core_type<tc>, window_params = [{transform_indices = @transform_0, window_bounds = array<i64: 16, 32>}, {transform_indices = @transform_1, window_bounds = array<i64: 32, 32>}, {transform_indices = @transform_2, window_bounds = array<i64: 32, 32>}, {transform_indices = @transform_3, window_bounds = array<i64: 1, 32>}, {transform_indices = @transform_4, window_bounds = array<i64: 1, 32>}, {transform_indices = @transform_5, window_bounds = array<i64: 16, 32>}]} {
    %c0 = arith.constant 0 : index
    %c0_0 = arith.constant 0 : index
    %0 = vector.load %arg2[%c0, %c0_0] : memref<16x32xbf16, #tpu.memory_space<vmem>>, vector<16x32xbf16>
    %c0_1 = arith.constant 0 : index
    %c0_2 = arith.constant 0 : index
    %1 = vector.load %arg3[%c0_1, %c0_2] : memref<32x32xbf16, #tpu.memory_space<vmem>>, vector<32x32xbf16>
    %cst = arith.constant dense<0.000000e+00> : vector<16x32xf32>
    %2 = tpu.matmul %0, %1, %cst {dimension_numbers = #tpu.dot_dimension_numbers<[1], [0], [0], [1], [0, 0, 1, 1], [], []>} : vector<16x32xbf16>, vector<32x32xbf16>, vector<16x32xf32> -> vector<16x32xf32>
    %c0_3 = arith.constant 0 : index
    %c0_4 = arith.constant 0 : index
    %3 = vector.load %arg5[%c0_3, %c0_4] : memref<1x32xf32, #tpu.memory_space<vmem>>, vector<1x32xf32>
    %4 = vector.broadcast %3 : vector<1x32xf32> to vector<16x32xf32>
    %5 = arith.addf %2, %4 : vector<16x32xf32>
    %c0_5 = arith.constant 0 : index
    %c0_6 = arith.constant 0 : index
    %6 = vector.load %arg4[%c0_5, %c0_6] : memref<32x32xbf16, #tpu.memory_space<vmem>>, vector<32x32xbf16>
    %cst_7 = arith.constant dense<0.000000e+00> : vector<16x32xf32>
    %7 = tpu.matmul %0, %6, %cst_7 {dimension_numbers = #tpu.dot_dimension_numbers<[1], [0], [0], [1], [0, 0, 1, 1], [], []>} : vector<16x32xbf16>, vector<32x32xbf16>, vector<16x32xf32> -> vector<16x32xf32>
    %c0_8 = arith.constant 0 : index
    %c0_9 = arith.constant 0 : index
    %8 = vector.load %arg6[%c0_8, %c0_9] : memref<1x32xf32, #tpu.memory_space<vmem>>, vector<1x32xf32>
    %9 = vector.broadcast %8 : vector<1x32xf32> to vector<16x32xf32>
    %10 = arith.addf %7, %9 : vector<16x32xf32>
    %cst_10 = arith.constant 5.000000e-01 : f32
    %11 = vector.broadcast %cst_10 : f32 to vector<16x32xf32>
    %12 = arith.mulf %11, %10 : vector<16x32xf32>
    %cst_11 = arith.constant 0.707106769 : f32
    %13 = vector.broadcast %cst_11 : f32 to vector<16x32xf32>
    %14 = arith.mulf %10, %13 : vector<16x32xf32>
    %15 = math.erf %14 : vector<16x32xf32>
    %cst_12 = arith.constant 1.000000e+00 : f32
    %16 = vector.broadcast %cst_12 : f32 to vector<16x32xf32>
    %17 = arith.addf %16, %15 : vector<16x32xf32>
    %18 = arith.mulf %12, %17 : vector<16x32xf32>
    %19 = arith.mulf %5, %18 : vector<16x32xf32>
    %20 = arith.truncf %19 : vector<16x32xf32> to vector<16x32xbf16>
    %c0_13 = arith.constant 0 : index
    %c0_14 = arith.constant 0 : index
    %21 = vector.load %arg7[%c0_13, %c0_14] : memref<16x32xbf16, #tpu.memory_space<vmem>>, vector<16x32xbf16>
    tpu.vector_store %arg7[%c0_13, %c0_14], %20 {strides = array<i32>} : memref<16x32xbf16, #tpu.memory_space<vmem>>, vector<16x32xbf16>,
    return
  }
  func.func @transform_0(%arg0: i32, %arg1: i32) -> (i32, i32) {
    %c0_i32 = arith.constant 0 : i32
    %c0_i32_0 = arith.constant 0 : i32
    return %arg1, %c0_i32 : i32, i32
  }
  func.func @transform_1(%arg0: i32, %arg1: i32) -> (i32, i32) {
    %c0_i32 = arith.constant 0 : i32
    %c0_i32_0 = arith.constant 0 : i32
    return %c0_i32, %arg0 : i32, i32
  }
  func.func @transform_2(%arg0: i32, %arg1: i32) -> (i32, i32) {
    %c0_i32 = arith.constant 0 : i32
    %c0_i32_0 = arith.constant 0 : i32
    return %c0_i32, %arg0 : i32, i32
  }
  func.func @transform_3(%arg0: i32, %arg1: i32) -> (i32, i32) {
    %c0_i32 = arith.constant 0 : i32
    %c0_i32_0 = arith.constant 0 : i32
    return %c0_i32, %arg0 : i32, i32
  }
  func.func @transform_4(%arg0: i32, %arg1: i32) -> (i32, i32) {
    %c0_i32 = arith.constant 0 : i32
    %c0_i32_0 = arith.constant 0 : i32
    return %c0_i32, %arg0 : i32, i32
  }
  func.func @transform_5(%arg0: i32, %arg1: i32) -> (i32, i32) {
    %c0_i32 = arith.constant 0 : i32
    return %arg1, %arg0 : i32, i32
  }
}

</mosaic_0001>

<llo_original>
// kernel: geglu.1
$region0: #{geglu.1}
  #allocation0 [shape = 'u32[]', space=smem, size = 0x4, offset = 0x4, fixed_abs, tag = 'smem constant byte address 0x4 - core index']
  #allocation1 [shape = 'u32[72,128]{1,0:T(1,128)}', space=vmem, size = 0x9000, scoped, tag = 'internal scratch']
  %s0 = inlined_call_operand.hbm [shape: bf16[16,32], index: 0, kind: input, shape index: {}]
  %s1 = inlined_call_operand.hbm [shape: bf16[32,32], index: 1, kind: input, shape index: {}]
  %s2 = inlined_call_operand.hbm [shape: bf16[32,32], index: 2, kind: input, shape index: {}]
  %s3 = inlined_call_operand.vmem [shape: f32[1,32], index: 3, kind: input, shape index: {}]
  %s4 = inlined_call_operand.vmem [shape: f32[1,32], index: 4, kind: input, shape index: {}]
  %s5 = inlined_call_operand.hbm [shape: bf16[16,32], index: 5, kind: output, shape index: {}]
  %s6 = sld [smem:[#allocation0]]
  $region42: #{geglu.1} parent=0
    _
  %s8 = ssub.s32 1, %s6
  %s9 = scalar_select 0, %s8, %s6
  $region1: #{geglu.1} parent=0
    #allocation2 [shape = 'u8[4096]{0}', space=vmem, size = 0x1000, scoped, tag = 'input window, operand 0, single buffered']
    #allocation3 [shape = 's32[1]{0}', space=sflag, size = 0x4, scoped, tag = 'scoped memory for geglu.1']
    #allocation4 [shape = 's32[1]{0}', space=sflag, size = 0x4, scoped, tag = 'scoped memory for geglu.1']
    #allocation5 [shape = 'u8[8192]{0}', space=vmem, size = 0x2000, scoped, tag = 'input window, operand 1, single buffered']
    #allocation6 [shape = 's32[1]{0}', space=sflag, size = 0x4, scoped, tag = 'scoped memory for geglu.1']
    #allocation7 [shape = 'u8[8192]{0}', space=vmem, size = 0x2000, scoped, tag = 'input window, operand 2, single buffered']
    #allocation8 [shape = 'u8[4096]{0}', space=vmem, size = 0x1000, scoped, tag = 'output window, operand 0, single buffered']
    %10 = vsyncpa [#allocation3], 0
    %11 = vsyncpa [#allocation6], 0
    %12 = vsyncpa [#allocation4], 0
    // Predicated region
    $region2: #{geglu.1} parent=1 // pred_check
      _
    $region3: #{geglu.1} parent=1 // pred_check_branch
      %14 = sbr.rel (0) target = $region5
    $region4: #{geglu.1} parent=1 // pred_region
      %16 = vsyncadd [#allocation3], 0
      %s17 = sshll.u32 %s0, 4
      %s18 = int_to_ptr.hbm [resolvable:$true] %s17
      %s19 = sshll.u32 [#allocation2], 4
      %s20 = int_to_ptr.vmem [resolvable:$true] %s19
      %25 = dma.hbm_to_vmem [thread:$0]  %s18, 128, %s20, [#allocation3], 64, 64, 4
    $region5: #{geglu.1} parent=1 // pred_fallthru
      _
    // Predicated region
    $region6: #{geglu.1} parent=1 // pred_check
      _
    $region7: #{geglu.1} parent=1 // pred_check_branch
      %27 = sbr.rel (0) target = $region9
    $region8: #{geglu.1} parent=1 // pred_region
      %29 = vsyncadd [#allocation6], 0
      %s30 = sshll.u32 %s1, 4
      %s31 = int_to_ptr.hbm [resolvable:$true] %s30
      %s32 = sshll.u32 [#allocation5], 4
      %s33 = int_to_ptr.vmem [resolvable:$true] %s32
      %38 = dma.hbm_to_vmem [thread:$0]  %s31, 256, %s33, [#allocation6], 64, 64, 4
    $region9: #{geglu.1} parent=1 // pred_fallthru
      _
    // Predicated region
    $region10: #{geglu.1} parent=1 // pred_check
      _
    $region11: #{geglu.1} parent=1 // pred_check_branch
      %40 = sbr.rel (0) target = $region13
    $region12: #{geglu.1} parent=1 // pred_region
      %42 = vsyncadd [#allocation6], 0
      %s43 = sshll.u32 %s2, 4
      %s44 = int_to_ptr.hbm [resolvable:$true] %s43
      %s45 = sshll.u32 [#allocation7], 4
      %s46 = int_to_ptr.vmem [resolvable:$true] %s45
      %51 = dma.hbm_to_vmem [thread:$0]  %s44, 256, %s46, [#allocation6], 64, 64, 4
    $region13: #{geglu.1} parent=1 // pred_fallthru
      _
    // Predicated region
    $region14: #{geglu.1} parent=1 // pred_check
      _
    $region15: #{geglu.1} parent=1 // pred_check_branch
      %53 = sbr.rel (0) target = $region17
    $region16: #{geglu.1} parent=1 // pred_region
      _
    $region17: #{geglu.1} parent=1 // pred_fallthru
      _
    // Predicated region
    $region18: #{geglu.1} parent=1 // pred_check
      _
    $region19: #{geglu.1} parent=1 // pred_check_branch
      %55 = sbr.rel (0) target = $region21
    $region20: #{geglu.1} parent=1 // pred_region
      _
    $region21: #{geglu.1} parent=1 // pred_fallthru
      _
    // Predicated region
    $region22: #{geglu.1} parent=1 // pred_check
      _
    $region23: #{geglu.1} parent=1 // pred_check_branch
      %57 = sbr.rel (0) target = $region25
    $region24: #{geglu.1} parent=1 // pred_region
      %59 = dma.done [#allocation3], 128
    $region25: #{geglu.1} parent=1 // pred_fallthru
      _
    // Predicated region
    $region26: #{geglu.1} parent=1 // pred_check
      _
    $region27: #{geglu.1} parent=1 // pred_check_branch
      %61 = sbr.rel (0) target = $region29
    $region28: #{geglu.1} parent=1 // pred_region
      %63 = dma.done [#allocation6], 256
    $region29: #{geglu.1} parent=1 // pred_fallthru
      _
    // Predicated region
    $region30: #{geglu.1} parent=1 // pred_check
      _
    $region31: #{geglu.1} parent=1 // pred_check_branch
      %65 = sbr.rel (0) target = $region33
    $region32: #{geglu.1} parent=1 // pred_region
      %67 = dma.done [#allocation6], 256
    $region33: #{geglu.1} parent=1 // pred_fallthru
      _
    %v69 = vld [vmem:[#allocation2] sm:$0xf]
    %v70 = vld [vmem:[#allocation2 + $0x4] sm:$0xf]
    %v71 = vld [vmem:[#allocation5] sm:$0xf]
    %v72 = vld [vmem:[#allocation5 + $0x4] sm:$0xf]
    %v73 = vld [vmem:[#allocation5 + $0x8] sm:$0xf]
    %v74 = vld [vmem:[#allocation5 + $0xc] sm:$0xf]
    %v75 = vld [vmem:[%s3] sm:$0x1]
    %v77 = vperm.slane %v75, 0
    %v81 = vunpack.c.l.b16 %v69
    %v82 = vunpack.c.l.b16 %v70
    %v83 = vpack.c.b16 %v82, %v81
    %v88 = vunpack.c.l.b16 %v71
    %v89 = vunpack.c.l.b16 %v72
    %v90 = vunpack.c.l.b16 %v73
    %v91 = vunpack.c.l.b16 %v74
    %v92 = vpack.c.b16 %v89, %v88
    %v93 = vpack.c.b16 %v91, %v90
    %vm96 = vcmask 261120
    %v98 = vsel %vm96, %v83, 0
    %100 = vmatpush.bf16.msra.mxu0 0
    %101 = vmatpush.bf16.msra.mxu0 0
    %102 = vmatpush.bf16.msra.mxu0 0
    %103 = vmatpush.bf16.msra.mxu0 0
    %104 = vmatpush.bf16.msra.mxu0 0
    %105 = vmatpush.bf16.msra.mxu0 0
    %106 = vmatpush.bf16.msra.mxu0 %v93
    %107 = vmatpush.bf16.msra.mxu0 %v92
    %108 = vmatmul.bf16.gmra.mxu0 %v98
    %v109 = vpop.f32.mrf.mxu0
    %v110 = vadd.f32 %v77, %v109
    %v111 = vpop.f32.mrf.mxu0
    %v112 = vadd.f32 %v77, %v111
    %113 = vdwg.mxu0
    %v114 = vld [vmem:[#allocation7] sm:$0xf]
    %v115 = vld [vmem:[#allocation7 + $0x4] sm:$0xf]
    %v116 = vld [vmem:[#allocation7 + $0x8] sm:$0xf]
    %v117 = vld [vmem:[#allocation7 + $0xc] sm:$0xf]
    %v118 = vld [vmem:[%s4] sm:$0x1]
    %v120 = vperm.slane %v118, 0
    %v126 = vunpack.c.l.b16 %v114
    %v127 = vunpack.c.l.b16 %v115
    %v128 = vunpack.c.l.b16 %v116
    %v129 = vunpack.c.l.b16 %v117
    %v130 = vpack.c.b16 %v127, %v126
    %v131 = vpack.c.b16 %v129, %v128
    %134 = vmatpush.bf16.msra.mxu0 0
    %135 = vmatpush.bf16.msra.mxu0 0
    %136 = vmatpush.bf16.msra.mxu0 0
    %137 = vmatpush.bf16.msra.mxu0 0
    %138 = vmatpush.bf16.msra.mxu0 0
    %139 = vmatpush.bf16.msra.mxu0 0
    %140 = vmatpush.bf16.msra.mxu0 %v131
    %141 = vmatpush.bf16.msra.mxu0 %v130
    %142 = vmatmul.bf16.gmra.mxu0 %v98
    %v143 = vpop.f32.mrf.mxu0
    %v144 = vadd.f32 %v120, %v143
    %v145 = vpop.f32.mrf.mxu0
    %v146 = vadd.f32 %v120, %v145
    %147 = vdwg.mxu0
    %v148 = vmul.f32 %v144, 0.5
    %v149 = vmul.f32 %v146, 0.5
    %v150 = vmul.f32 %v144, 0.70710677
    %v151 = vmul.f32 %v146, 0.70710677
    %v152 = vmul.f32 %v150, %v150
    %v153 = vmin.f32 16.0, %v152
    %v154 = vmul.f32 %v153, 2.1237322e-06
    %v155 = vadd.f32 %v154, 0.00028619796
    %v156 = vmul.f32 %v153, %v155
    %v157 = vadd.f32 %v156, 0.0036580483
    %v158 = vmul.f32 %v153, %v157
    %v159 = vadd.f32 %v158, 0.05243302
    %v160 = vmul.f32 %v153, %v159
    %v161 = vadd.f32 %v160, 0.18741608
    %v162 = vmul.f32 %v153, %v161
    %v163 = vadd.f32 %v162, 1.1283791
    %v164 = vmul.f32 %v150, %v163
    %v165 = vmul.f32 %v153, 3.8918573e-05
    %v166 = vadd.f32 %v165, 0.001143296
    %v167 = vmul.f32 %v153, %v166
    %v168 = vadd.f32 %v167, 0.014752088
    %v169 = vmul.f32 %v153, %v168
    %v170 = vadd.f32 %v169, 0.112945676
    %v171 = vmul.f32 %v153, %v170
    %v172 = vadd.f32 %v171, 0.4994258
    %v173 = vmul.f32 %v153, %v172
    %v174 = vadd.f32 %v173, 1.0
    %v175 = vrcp.pop %v174
    %v176 = vmul.f32 %v174, %v175
    %v177 = vsub.f32 1.0, %v176
    %v178 = vmul.f32 %v175, %v177
    %v179 = vadd.f32 %v175, %v178
    %vm180 = vweird.f32 %v174
    %vm181 = vweird.f32 %v175
    %vm182 = vmor %vm180, %vm181
    %v183 = vsel %vm182, %v175, %v179
    %v184 = vand.u32 2147483647, %v174
    %vm185 = vcmp.eq.f32.partialorder %v184, 8.507059e+37
    %v186 = vand.u32 %v174, 2147483648
    %v187 = vor.u32 1.1754944e-38, %v186
    %v188 = vsel %vm185, %v187, %v183
    %v189 = vmul.f32 %v164, %v188
    %v190 = vmin.f32 %v189, 1.0
    %v191 = vmax.f32 %v190, -1.0
    %v192 = vmul.f32 %v151, %v151
    %v193 = vmin.f32 16.0, %v192
    %v194 = vmul.f32 %v193, 2.1237322e-06
    %v195 = vadd.f32 %v194, 0.00028619796
    %v196 = vmul.f32 %v193, %v195
    %v197 = vadd.f32 %v196, 0.0036580483
    %v198 = vmul.f32 %v193, %v197
    %v199 = vadd.f32 %v198, 0.05243302
    %v200 = vmul.f32 %v193, %v199
    %v201 = vadd.f32 %v200, 0.18741608
    %v202 = vmul.f32 %v193, %v201
    %v203 = vadd.f32 %v202, 1.1283791
    %v204 = vmul.f32 %v151, %v203
    %v205 = vmul.f32 %v193, 3.8918573e-05
    %v206 = vadd.f32 %v205, 0.001143296
    %v207 = vmul.f32 %v193, %v206
    %v208 = vadd.f32 %v207, 0.014752088
    %v209 = vmul.f32 %v193, %v208
    %v210 = vadd.f32 %v209, 0.112945676
    %v211 = vmul.f32 %v193, %v210
    %v212 = vadd.f32 %v211, 0.4994258
    %v213 = vmul.f32 %v193, %v212
    %v214 = vadd.f32 %v213, 1.0
    %v215 = vrcp.pop %v214
    %v216 = vmul.f32 %v214, %v215
    %v217 = vsub.f32 1.0, %v216
    %v218 = vmul.f32 %v215, %v217
    %v219 = vadd.f32 %v215, %v218
    %vm220 = vweird.f32 %v214
    %vm221 = vweird.f32 %v215
    %vm222 = vmor %vm220, %vm221
    %v223 = vsel %vm222, %v215, %v219
    %v224 = vand.u32 2147483647, %v214
    %vm225 = vcmp.eq.f32.partialorder %v224, 8.507059e+37
    %v226 = vand.u32 %v214, 2147483648
    %v227 = vor.u32 1.1754944e-38, %v226
    %v228 = vsel %vm225, %v227, %v223
    %v229 = vmul.f32 %v204, %v228
    %v230 = vmin.f32 %v229, 1.0
    %v231 = vmax.f32 %v230, -1.0
    %v232 = vadd.f32 %v191, 1.0
    %v233 = vadd.f32 %v231, 1.0
    %v234 = vmul.f32 %v148, %v232
    %v235 = vmul.f32 %v149, %v233
    %v236 = vmul.f32 %v110, %v234
    %v237 = vmul.f32 %v112, %v235
    %v238 = vpack.c.bf16 %v236, %v236
    %v239 = vpack.c.bf16 %v237, %v237
    %vm240 = vcmask 257024
    %241 = vst.msk [vmem:[#allocation8] sm:$0xf] %vm240, %v238
    %242 = vst.msk [vmem:[#allocation8 + $0x4] sm:$0xf] %vm240, %v239
    // Predicated region
    $region34: #{geglu.1} parent=1 // pred_check
      _
    $region35: #{geglu.1} parent=1 // pred_check_branch
      %244 = sbr.rel (0) target = $region37
    $region36: #{geglu.1} parent=1 // pred_region
      %246 = vsyncadd [#allocation4], 0
      %s247 = sshll.u32 [#allocation8], 4
      %s248 = int_to_ptr.vmem [resolvable:$true] %s247
      %s249 = sshll.u32 %s5, 4
      %s250 = int_to_ptr.hbm [resolvable:$true] %s249
      %255 = dma.vmem_to_hbm [thread:$0]  %s248, 128, %s250, [#allocation4], 64, 64, 4
    $region37: #{geglu.1} parent=1 // pred_fallthru
      _
    // Predicated region
    $region38: #{geglu.1} parent=1 // pred_check
      _
    $region39: #{geglu.1} parent=1 // pred_check_branch
      %257 = sbr.rel (0) target = $region41
    $region40: #{geglu.1} parent=1 // pred_region
      %259 = dma.done [#allocation4], 128
    $region41: #{geglu.1} parent=1 // pred_fallthru
      _
    %260 = vsyncpa [#allocation3], 1
    %261 = vsyncpa [#allocation6], 1
    %262 = vsyncpa [#allocation4], 1

// kernel: geglu.1
$region0: #{geglu.1}
  #allocation0 [shape = 'u32[]', space=smem, size = 0x4, offset = 0x4, fixed_abs, tag = 'smem constant byte address 0x4 - core index']
  #allocation1 [shape = 'u32[72,128]{1,0:T(1,128)}', space=vmem, size = 0x9000, scoped, tag = 'internal scratch']
  %s0 = inlined_call_operand.hbm [shape: bf16[16,32], index: 0, kind: input, shape index: {}]
  %s1 = inlined_call_operand.hbm [shape: bf16[32,32], index: 1, kind: input, shape index: {}]
  %s2 = inlined_call_operand.hbm [shape: bf16[32,32], index: 2, kind: input, shape index: {}]
  %s3 = inlined_call_operand.vmem [shape: f32[1,32], index: 3, kind: input, shape index: {}]
  %s4 = inlined_call_operand.vmem [shape: f32[1,32], index: 4, kind: input, shape index: {}]
  %s5 = inlined_call_operand.hbm [shape: bf16[16,32], index: 5, kind: output, shape index: {}]
  %s6 = sld [smem:[#allocation0]]
  $region42: #{geglu.1} parent=0
    _
  %s8 = ssub.s32 1, %s6
  %s9 = scalar_select 0, %s8, %s6
  $region1: #{geglu.1} parent=0
    #allocation2 [shape = 'u8[4096]{0}', space=vmem, size = 0x1000, scoped, tag = 'input window, operand 0, single buffered']
    #allocation3 [shape = 's32[1]{0}', space=sflag, size = 0x4, scoped, tag = 'scoped memory for geglu.1']
    #allocation4 [shape = 's32[1]{0}', space=sflag, size = 0x4, scoped, tag = 'scoped memory for geglu.1']
    #allocation5 [shape = 'u8[8192]{0}', space=vmem, size = 0x2000, scoped, tag = 'input window, operand 1, single buffered']
    #allocation6 [shape = 's32[1]{0}', space=sflag, size = 0x4, scoped, tag = 'scoped memory for geglu.1']
    #allocation7 [shape = 'u8[8192]{0}', space=vmem, size = 0x2000, scoped, tag = 'input window, operand 2, single buffered']
    #allocation8 [shape = 'u8[4096]{0}', space=vmem, size = 0x1000, scoped, tag = 'output window, operand 0, single buffered']
    %10 = vsyncpa [#allocation3], 0
    %11 = vsyncpa [#allocation6], 0
    %12 = vsyncpa [#allocation4], 0
    // Predicated region
    $region2: #{geglu.1} parent=1 // pred_check
      _
    $region3: #{geglu.1} parent=1 // pred_check_branch
      %14 = sbr.rel (0) target = $region5
    $region4: #{geglu.1} parent=1 // pred_region
      %16 = vsyncadd [#allocation3], 0
      %s17 = sshll.u32 %s0, 4
      %s18 = int_to_ptr.hbm [resolvable:$true] %s17
      %s19 = sshll.u32 [#allocation2], 4
      %s20 = int_to_ptr.vmem [resolvable:$true] %s19
      %25 = dma.hbm_to_vmem [thread:$0]  %s18, 128, %s20, [#allocation3], 64, 64, 4
    $region5: #{geglu.1} parent=1 // pred_fallthru
      _
    // Predicated region
    $region6: #{geglu.1} parent=1 // pred_check
      _
    $region7: #{geglu.1} parent=1 // pred_check_branch
      %27 = sbr.rel (0) target = $region9
    $region8: #{geglu.1} parent=1 // pred_region
      %29 = vsyncadd [#allocation6], 0
      %s30 = sshll.u32 %s1, 4
      %s31 = int_to_ptr.hbm [resolvable:$true] %s30
      %s32 = sshll.u32 [#allocation5], 4
      %s33 = int_to_ptr.vmem [resolvable:$true] %s32
      %38 = dma.hbm_to_vmem [thread:$0]  %s31, 256, %s33, [#allocation6], 64, 64, 4
    $region9: #{geglu.1} parent=1 // pred_fallthru
      _
    // Predicated region
    $region10: #{geglu.1} parent=1 // pred_check
      _
    $region11: #{geglu.1} parent=1 // pred_check_branch
      %40 = sbr.rel (0) target = $region13
    $region12: #{geglu.1} parent=1 // pred_region
      %42 = vsyncadd [#allocation6], 0
      %s43 = sshll.u32 %s2, 4
      %s44 = int_to_ptr.hbm [resolvable:$true] %s43
      %s45 = sshll.u32 [#allocation7], 4
      %s46 = int_to_ptr.vmem [resolvable:$true] %s45
      %51 = dma.hbm_to_vmem [thread:$0]  %s44, 256, %s46, [#allocation6], 64, 64, 4
    $region13: #{geglu.1} parent=1 // pred_fallthru
      _
    // Predicated region
    $region14: #{geglu.1} parent=1 // pred_check
      _
    $region15: #{geglu.1} parent=1 // pred_check_branch
      %53 = sbr.rel (0) target = $region17
    $region16: #{geglu.1} parent=1 // pred_region
      _
    $region17: #{geglu.1} parent=1 // pred_fallthru
      _
    // Predicated region
    $region18: #{geglu.1} parent=1 // pred_check
      _
    $region19: #{geglu.1} parent=1 // pred_check_branch
      %55 = sbr.rel (0) target = $region21
    $region20: #{geglu.1} parent=1 // pred_region
      _
    $region21: #{geglu.1} parent=1 // pred_fallthru
      _
    // Predicated region
    $region22: #{geglu.1} parent=1 // pred_check
      _
    $region23: #{geglu.1} parent=1 // pred_check_branch
      %57 = sbr.rel (0) target = $region25
    $region24: #{geglu.1} parent=1 // pred_region
      %59 = dma.done [#allocation3], 128
    $region25: #{geglu.1} parent=1 // pred_fallthru
      _
    // Predicated region
    $region26: #{geglu.1} parent=1 // pred_check
      _
    $region27: #{geglu.1} parent=1 // pred_check_branch
      %61 = sbr.rel (0) target = $region29
    $region28: #{geglu.1} parent=1 // pred_region
      %63 = dma.done [#allocation6], 256
    $region29: #{geglu.1} parent=1 // pred_fallthru
      _
    // Predicated region
    $region30: #{geglu.1} parent=1 // pred_check
      _
    $region31: #{geglu.1} parent=1 // pred_check_branch
      %65 = sbr.rel (0) target = $region33
    $region32: #{geglu.1} parent=1 // pred_region
      %67 = dma.done [#allocation6], 256
    $region33: #{geglu.1} parent=1 // pred_fallthru
      _
    %v69 = vld [vmem:[#allocation2] sm:$0xf]
    %v70 = vld [vmem:[#allocation2 + $0x4] sm:$0xf]
    %v71 = vld [vmem:[#allocation5] sm:$0xf]
    %v72 = vld [vmem:[#allocation5 + $0x4] sm:$0xf]
    %v73 = vld [vmem:[#allocation5 + $0x8] sm:$0xf]
    %v74 = vld [vmem:[#allocation5 + $0xc] sm:$0xf]
    %v75 = vld [vmem:[%s3] sm:$0x1]
    %v77 = vperm.slane %v75, 0
    %v81 = vunpack.c.l.b16 %v69
    %v82 = vunpack.c.l.b16 %v70
    %v83 = vpack.c.b16 %v82, %v81
    %v88 = vunpack.c.l.b16 %v71
    %v89 = vunpack.c.l.b16 %v72
    %v90 = vunpack.c.l.b16 %v73
    %v91 = vunpack.c.l.b16 %v74
    %v92 = vpack.c.b16 %v89, %v88
    %v93 = vpack.c.b16 %v91, %v90
    %vm96 = vcmask 261120
    %v98 = vsel %vm96, %v83, 0
    %100 = vmatpush.bf16.msra.mxu0 0
    %101 = vmatpush.bf16.msra.mxu0 0
    %102 = vmatpush.bf16.msra.mxu0 0
    %103 = vmatpush.bf16.msra.mxu0 0
    %104 = vmatpush.bf16.msra.mxu0 0
    %105 = vmatpush.bf16.msra.mxu0 0
    %106 = vmatpush.bf16.msra.mxu0 %v93
    %107 = vmatpush.bf16.msra.mxu0 %v92
    %108 = vmatmul.bf16.gmra.mxu0 %v98
    %v109 = vpop.f32.mrf.mxu0
    %v110 = vadd.f32 %v77, %v109
    %v111 = vpop.f32.mrf.mxu0
    %v112 = vadd.f32 %v77, %v111
    %113 = vdwg.mxu0
    %v114 = vld [vmem:[#allocation7] sm:$0xf]
    %v115 = vld [vmem:[#allocation7 + $0x4] sm:$0xf]
    %v116 = vld [vmem:[#allocation7 + $0x8] sm:$0xf]
    %v117 = vld [vmem:[#allocation7 + $0xc] sm:$0xf]
    %v118 = vld [vmem:[%s4] sm:$0x1]
    %v120 = vperm.slane %v118, 0
    %v126 = vunpack.c.l.b16 %v114
    %v127 = vunpack.c.l.b16 %v115
    %v128 = vunpack.c.l.b16 %v116
    %v129 = vunpack.c.l.b16 %v117
    %v130 = vpack.c.b16 %v127, %v126
    %v131 = vpack.c.b16 %v129, %v128
    %134 = vmatpush.bf16.msra.mxu0 0
    %135 = vmatpush.bf16.msra.mxu0 0
    %136 = vmatpush.bf16.msra.mxu0 0
    %137 = vmatpush.bf16.msra.mxu0 0
    %138 = vmatpush.bf16.msra.mxu0 0
    %139 = vmatpush.bf16.msra.mxu0 0
    %140 = vmatpush.bf16.msra.mxu0 %v131
    %141 = vmatpush.bf16.msra.mxu0 %v130
    %142 = vmatmul.bf16.gmra.mxu0 %v98
    %v143 = vpop.f32.mrf.mxu0
    %v144 = vadd.f32 %v120, %v143
    %v145 = vpop.f32.mrf.mxu0
    %v146 = vadd.f32 %v120, %v145
    %147 = vdwg.mxu0
    %v148 = vmul.f32 %v144, 0.5
    %v149 = vmul.f32 %v146, 0.5
    %v150 = vmul.f32 %v144, 0.70710677
    %v151 = vmul.f32 %v146, 0.70710677
    %v152 = vmul.f32 %v150, %v150
    %v153 = vmin.f32 16.0, %v152
    %v154 = vmul.f32 %v153, 2.1237322e-06
    %v155 = vadd.f32 %v154, 0.00028619796
    %v156 = vmul.f32 %v153, %v155
    %v157 = vadd.f32 %v156, 0.0036580483
    %v158 = vmul.f32 %v153, %v157
    %v159 = vadd.f32 %v158, 0.05243302
    %v160 = vmul.f32 %v153, %v159
    %v161 = vadd.f32 %v160, 0.18741608
    %v162 = vmul.f32 %v153, %v161
    %v163 = vadd.f32 %v162, 1.1283791
    %v164 = vmul.f32 %v150, %v163
    %v165 = vmul.f32 %v153, 3.8918573e-05
    %v166 = vadd.f32 %v165, 0.001143296
    %v167 = vmul.f32 %v153, %v166
    %v168 = vadd.f32 %v167, 0.014752088
    %v169 = vmul.f32 %v153, %v168
    %v170 = vadd.f32 %v169, 0.112945676
    %v171 = vmul.f32 %v153, %v170
    %v172 = vadd.f32 %v171, 0.4994258
    %v173 = vmul.f32 %v153, %v172
    %v174 = vadd.f32 %v173, 1.0
    %v175 = vrcp.pop %v174
    %v176 = vmul.f32 %v174, %v175
    %v177 = vsub.f32 1.0, %v176
    %v178 = vmul.f32 %v175, %v177
    %v179 = vadd.f32 %v175, %v178
    %vm180 = vweird.f32 %v174
    %vm181 = vweird.f32 %v175
    %vm182 = vmor %vm180, %vm181
    %v183 = vsel %vm182, %v175, %v179
    %v184 = vand.u32 2147483647, %v174
    %vm185 = vcmp.eq.f32.partialorder %v184, 8.507059e+37
    %v186 = vand.u32 %v174, 2147483648
    %v187 = vor.u32 1.1754944e-38, %v186
    %v188 = vsel %vm185, %v187, %v183
    %v189 = vmul.f32 %v164, %v188
    %v190 = vmin.f32 %v189, 1.0
    %v191 = vmax.f32 %v190, -1.0
    %v192 = vmul.f32 %v151, %v151
    %v193 = vmin.f32 16.0, %v192
    %v194 = vmul.f32 %v193, 2.1237322e-06
    %v195 = vadd.f32 %v194, 0.00028619796
    %v196 = vmul.f32 %v193, %v195
    %v197 = vadd.f32 %v196, 0.0036580483
    %v198 = vmul.f32 %v193, %v197
    %v199 = vadd.f32 %v198, 0.05243302
    %v200 = vmul.f32 %v193, %v199
    %v201 = vadd.f32 %v200, 0.18741608
    %v202 = vmul.f32 %v193, %v201
    %v203 = vadd.f32 %v202, 1.1283791
    %v204 = vmul.f32 %v151, %v203
    %v205 = vmul.f32 %v193, 3.8918573e-05
    %v206 = vadd.f32 %v205, 0.001143296
    %v207 = vmul.f32 %v193, %v206
    %v208 = vadd.f32 %v207, 0.014752088
    %v209 = vmul.f32 %v193, %v208
    %v210 = vadd.f32 %v209, 0.112945676
    %v211 = vmul.f32 %v193, %v210
    %v212 = vadd.f32 %v211, 0.4994258
    %v213 = vmul.f32 %v193, %v212
    %v214 = vadd.f32 %v213, 1.0
    %v215 = vrcp.pop %v214
    %v216 = vmul.f32 %v214, %v215
    %v217 = vsub.f32 1.0, %v216
    %v218 = vmul.f32 %v215, %v217
    %v219 = vadd.f32 %v215, %v218
    %vm220 = vweird.f32 %v214
    %vm221 = vweird.f32 %v215
    %vm222 = vmor %vm220, %vm221
    %v223 = vsel %vm222, %v215, %v219
    %v224 = vand.u32 2147483647, %v214
    %vm225 = vcmp.eq.f32.partialorder %v224, 8.507059e+37
    %v226 = vand.u32 %v214, 2147483648
    %v227 = vor.u32 1.1754944e-38, %v226
    %v228 = vsel %vm225, %v227, %v223
    %v229 = vmul.f32 %v204, %v228
    %v230 = vmin.f32 %v229, 1.0
    %v231 = vmax.f32 %v230, -1.0
    %v232 = vadd.f32 %v191, 1.0
    %v233 = vadd.f32 %v231, 1.0
    %v234 = vmul.f32 %v148, %v232
    %v235 = vmul.f32 %v149, %v233
    %v236 = vmul.f32 %v110, %v234
    %v237 = vmul.f32 %v112, %v235
    %v238 = vpack.c.bf16 %v236, %v236
    %v239 = vpack.c.bf16 %v237, %v237
    %vm240 = vcmask 257024
    %241 = vst.msk [vmem:[#allocation8] sm:$0xf] %vm240, %v238
    %242 = vst.msk [vmem:[#allocation8 + $0x4] sm:$0xf] %vm240, %v239
    // Predicated region
    $region34: #{geglu.1} parent=1 // pred_check
      _
    $region35: #{geglu.1} parent=1 // pred_check_branch
      %244 = sbr.rel (0) target = $region37
    $region36: #{geglu.1} parent=1 // pred_region
      %246 = vsyncadd [#allocation4], 0
      %s247 = sshll.u32 [#allocation8], 4
      %s248 = int_to_ptr.vmem [resolvable:$true] %s247
      %s249 = sshll.u32 %s5, 4
      %s250 = int_to_ptr.hbm [resolvable:$true] %s249
      %255 = dma.vmem_to_hbm [thread:$0]  %s248, 128, %s250, [#allocation4], 64, 64, 4
    $region37: #{geglu.1} parent=1 // pred_fallthru
      _
    // Predicated region
    $region38: #{geglu.1} parent=1 // pred_check
      _
    $region39: #{geglu.1} parent=1 // pred_check_branch
      %257 = sbr.rel (0) target = $region41
    $region40: #{geglu.1} parent=1 // pred_region
      %259 = dma.done [#allocation4], 128
    $region41: #{geglu.1} parent=1 // pred_fallthru
      _
    %260 = vsyncpa [#allocation3], 1
    %261 = vsyncpa [#allocation6], 1
    %262 = vsyncpa [#allocation4], 1

</llo_original>
